<compile_context>
chip_gen: v5e
topology: v5e:2x2
jax: 0.10.0
libtpu: 0.0.40
codegen_flags: <defaults>
</compile_context>

<pallas_src>
import numpy as np
import jax
import jax.numpy as jnp
from jax.experimental import pallas as pl
from jax.experimental.pallas import tpu as pltpu

_TWO_PI = 2.0 * np.pi
_MAX_TILE_B = 65536          # hard cap on rows per grid step
_DEFAULT_VMEM_BUDGET = 16 * 1024 * 1024   # double-buffered I/O + temps budget


def _round_up(n, m):
    return ((n + m - 1) // m) * m


def _lane_pad(n):
    # VMEM buffers pad the minor (lane) dim to a multiple of 128.
    return _round_up(n, 128)


# ---------------------------------------------------------------------------
# Kernels
# ---------------------------------------------------------------------------
def _gfp_kernel_transposed(x_ref, w_ref, out_ref):
    # x_ref:   (1, TB)       — batch on the lane axis (lane-dense)
    # w_ref:   (half, 1)     — frequencies on the sublane axis
    # out_ref: (2*half, TB)  — [sin ; cos] stacked on sublanes, full-lane stores
    half = w_ref.shape[0]
    proj = w_ref[...] * x_ref[...] * _TWO_PI             # (half, TB) VPU bcast
    s = jnp.sin(proj).astype(out_ref.dtype)
    c = jnp.cos(proj).astype(out_ref.dtype)
    sub_tile = 8 * (4 // jnp.dtype(out_ref.dtype).itemsize)
    if half % sub_tile == 0:
        # Two sublane-tile-aligned slice stores: same bytes as the old concat
        # + single store, but no (2*half, TB) temporary / extra vreg pressure.
        out_ref[:half, :] = s
        out_ref[half:, :] = c
    else:
        out_ref[...] = jnp.concatenate([s, c], axis=0)


def _gfp_kernel_xpose(x_ref, w_ref, out_ref):
    # Lane-dense compute (full-lane EUP sin/cos) + in-kernel XLU transpose,
    # emitting the natural (B, embed_dim) layout directly — no wrapper-side
    # XLA transpose pass over the output in HBM.
    # x_ref:   (1, TB), w_ref: (half, 1), out_ref: (TB, 2*half)
    half = w_ref.shape[0]
    proj = w_ref[...] * x_ref[...] * _TWO_PI              # (half, TB)
    s_t = jnp.sin(proj).T.astype(out_ref.dtype)           # (TB, half) via XLU
    c_t = jnp.cos(proj).T.astype(out_ref.dtype)
    out_ref[...] = jnp.concatenate([s_t, c_t], axis=-1)   # one full-block store


def _gfp_kernel_natural(x_ref, w_ref, out_ref):
    # embed_dim % 128 == 0 path: the natural layout is already lane-dense,
    # so no transposed design is needed at all.
    # x_ref: (TB, 1), w_ref: (1, half), out_ref: (TB, 2*half)
    half = w_ref.shape[1]
    proj = x_ref[...] * w_ref[...] * _TWO_PI               # (TB, half)
    s = jnp.sin(proj).astype(out_ref.dtype)
    c = jnp.cos(proj).astype(out_ref.dtype)
    if half % 128 == 0:
        out_ref[:, :half] = s                               # lane-tile aligned
        out_ref[:, half:] = c
    else:
        out_ref[...] = jnp.concatenate([s, c], axis=-1)


# ---------------------------------------------------------------------------
# Wrapper
# ---------------------------------------------------------------------------
def gaussian_fourier_projection(x, W, *, transposed_output=False,
                                out_dtype=jnp.float32,
                                vmem_budget_bytes=_DEFAULT_VMEM_BUDGET):
    """x: (B,), W: (embed_dim//2,) -> (B, embed_dim) (PyTorch semantics).

    transposed_output=True returns (embed_dim, B) with zero transposes anywhere
    (for downstream matmuls that can take the transposed operand).
    """
    B = int(x.shape[0])
    half = int(W.shape[0])
    embed = 2 * half
    out_isz = jnp.dtype(out_dtype).itemsize

    natural_dense = (embed % 128 == 0)

    # --- per-batch-element VMEM bytes (double-buffered I/O + f32 temps),
    #     accounting for lane padding of narrow minor dims ---
    if transposed_output:
        per_elem = 2 * (embed * out_isz + 4) + 3 * half * 4
    elif natural_dense:
        per_elem = 2 * (_lane_pad(embed) * out_isz + 128 * 4) + 3 * _lane_pad(half) * 4
    else:
        per_elem = (2 * (_lane_pad(embed) * out_isz + 4)
                    + 3 * half * 4 + 2 * _lane_pad(half) * 4)

    tile_cap = (vmem_budget_bytes // per_elem) // 128 * 128
    tile_cap = max(128, min(tile_cap, _MAX_TILE_B))

    Bp0 = _round_up(B, 128)
    tile_b = min(tile_cap, Bp0)
    if tile_b >= Bp0 and Bp0 >= 512:
        # Ensure >= 2 grid steps so both v7x TensorCores get work.
        tile_b = _round_up(-(-Bp0 // 2), 128)
    Bp = _round_up(B, tile_b)
    grid = (Bp // tile_b,)

    x_f32 = jnp.pad(x.astype(jnp.float32).reshape(-1), (0, Bp - B))
    w_f32 = W.astype(jnp.float32).reshape(-1)

    cparams = pltpu.CompilerParams(
        dimension_semantics=("parallel",),
        vmem_limit_bytes=max(32 * 1024 * 1024, vmem_budget_bytes + (16 << 20)),
    )
    cost = pl.CostEstimate(
        flops=2 * Bp * half,                 # mul + 2*pi scale per element
        transcendentals=2 * Bp * half,       # sin + cos per element
        bytes_accessed=4 * (Bp + half) + out_isz * embed * Bp,
    )

    if transposed_output:
        x2 = x_f32.reshape(1, Bp)
        w2 = w_f32.reshape(half, 1)
        out = pl.pallas_call(
            _gfp_kernel_transposed,
            out_shape=jax.ShapeDtypeStruct((embed, Bp), out_dtype),
            grid_spec=pltpu.PrefetchScalarGridSpec(
                num_scalar_prefetch=0, grid=grid,
                in_specs=[pl.BlockSpec((1, tile_b), lambda i: (0, i)),
                          pl.BlockSpec((half, 1), lambda i: (0, 0))],
                out_specs=pl.BlockSpec((embed, tile_b), lambda i: (0, i))),
            compiler_params=cparams, cost_estimate=cost,
        )(x2, w2)
        return out if Bp == B else out[:, :B]

    if natural_dense:
        kernel = _gfp_kernel_natural
        x2 = x_f32.reshape(Bp, 1)
        w2 = w_f32.reshape(1, half)
        in_specs = [pl.BlockSpec((tile_b, 1), lambda i: (i, 0)),
                    pl.BlockSpec((1, half), lambda i: (0, 0))]
    else:
        kernel = _gfp_kernel_xpose
        x2 = x_f32.reshape(1, Bp)
        w2 = w_f32.reshape(half, 1)
        in_specs = [pl.BlockSpec((1, tile_b), lambda i: (0, i)),
                    pl.BlockSpec((half, 1), lambda i: (0, 0))]

    out = pl.pallas_call(
        kernel,
        out_shape=jax.ShapeDtypeStruct((Bp, embed), out_dtype),
        grid_spec=pltpu.PrefetchScalarGridSpec(
            num_scalar_prefetch=0, grid=grid,
            in_specs=in_specs,
            out_specs=pl.BlockSpec((tile_b, embed), lambda i: (i, 0))),
        compiler_params=cparams, cost_estimate=cost,
    )(x2, w2)
    return out if Bp == B else out[:B]


# ---------------------------------------------------------------------------
# Self-test
# ---------------------------------------------------------------------------
if __name__ == "__main__":
    key = jax.random.PRNGKey(0)
    k_w, k_x = jax.random.split(key)

    embed_dim = 32
    scale = 30.0
    batch = 8

    # Same semantics as torch.randn(embed_dim//2) * scale (fixed parameter)
    W = jax.random.normal(k_w, (embed_dim // 2,), dtype=jnp.float32) * scale
    x = jax.random.uniform(k_x, (batch,), dtype=jnp.float32)

    def ref(x, W):
        proj = x[:, None] * W[None, :] * 2.0 * np.pi
        return jnp.concatenate([jnp.sin(proj), jnp.cos(proj)], axis=-1)

    expected = ref(x, W)

    # 1) Default path (PyTorch layout, embed_dim < 128 -> in-kernel transpose)
    out = jax.block_until_ready(gaussian_fourier_projection(x, W))
    assert out.shape == (batch, embed_dim)
    np.testing.assert_allclose(np.asarray(out), np.asarray(expected),
                               rtol=1e-5, atol=1e-5)

    # 2) Zero-transpose (embed_dim, B) layout for fused consumers
    out_t = jax.block_until_ready(
        gaussian_fourier_projection(x, W, transposed_output=True))
    assert out_t.shape == (embed_dim, batch)
    np.testing.assert_allclose(np.asarray(out_t), np.asarray(expected.T),
                               rtol=1e-5, atol=1e-5)

    # 3) Lane-dense natural path (embed_dim multiple of 128)
    W128 = jax.random.normal(k_w, (64,), dtype=jnp.float32) * scale
    out128 = jax.block_until_ready(gaussian_fourier_projection(x, W128))
    assert out128.shape == (batch, 128)
    np.testing.assert_allclose(np.asarray(out128), np.asarray(ref(x, W128)),
                               rtol=1e-5, atol=1e-5)

    print("KERNEL_OK")
</pallas_src>

<mosaic_0001>
module attributes {stable_mosaic.version = 11 : i64} {
  func.func @_gfp_kernel_xpose(%arg0: i32, %arg1: memref<1x128xf32, #tpu.memory_space<vmem>>, %arg2: memref<16x1xf32, #tpu.memory_space<vmem>>, %arg3: memref<128x32xf32, #tpu.memory_space<vmem>>) attributes {dimension_semantics = [#tpu.dimension_semantics<parallel>], iteration_bounds = array<i64: 1>, scalar_prefetch = 0 : i64, scratch_operands = 0 : i64, tpu.core_type = #tpu.core_type<tc>, window_params = [{transform_indices = @transform_0, window_bounds = array<i64: 1, 128>}, {pipeline_mode = #tpu.pipeline_mode<synchronous>, transform_indices = @transform_1, window_bounds = array<i64: 16, 1>}, {transform_indices = @transform_2, window_bounds = array<i64: 128, 32>}]} {
    %c0 = arith.constant 0 : index
    %c0_0 = arith.constant 0 : index
    %0 = vector.load %arg2[%c0, %c0_0] : memref<16x1xf32, #tpu.memory_space<vmem>>, vector<16x1xf32>
    %c0_1 = arith.constant 0 : index
    %c0_2 = arith.constant 0 : index
    %1 = vector.load %arg1[%c0_1, %c0_2] : memref<1x128xf32, #tpu.memory_space<vmem>>, vector<1x128xf32>
    %2 = vector.broadcast %0 : vector<16x1xf32> to vector<16x128xf32>
    %3 = vector.broadcast %1 : vector<1x128xf32> to vector<16x128xf32>
    %4 = arith.mulf %2, %3 : vector<16x128xf32>
    %cst = arith.constant 6.28318548 : f32
    %5 = vector.broadcast %cst : f32 to vector<16x128xf32>
    %6 = arith.mulf %4, %5 : vector<16x128xf32>
    %7 = math.sin %6 : vector<16x128xf32>
    %8 = tpu.transpose %7, [1, 0] : vector<16x128xf32> -> vector<128x16xf32>
    %9 = math.cos %6 : vector<16x128xf32>
    %10 = tpu.transpose %9, [1, 0] : vector<16x128xf32> -> vector<128x16xf32>
    %11 = tpu.concatenate %8, %10 in 1 : vector<128x16xf32>, vector<128x16xf32> -> vector<128x32xf32>
    %c0_3 = arith.constant 0 : index
    %c0_4 = arith.constant 0 : index
    %12 = vector.load %arg3[%c0_3, %c0_4] : memref<128x32xf32, #tpu.memory_space<vmem>>, vector<128x32xf32>
    tpu.vector_store %arg3[%c0_3, %c0_4], %11 {strides = array<i32>} : memref<128x32xf32, #tpu.memory_space<vmem>>, vector<128x32xf32>,
    return
  }
  func.func @transform_0(%arg0: i32) -> (i32, i32) {
    %c0_i32 = arith.constant 0 : i32
    %c0_i32_0 = arith.constant 0 : i32
    return %c0_i32, %arg0 : i32, i32
  }
  func.func @transform_1(%arg0: i32) -> (i32, i32) {
    %c0_i32 = arith.constant 0 : i32
    %c0_i32_0 = arith.constant 0 : i32
    %c0_i32_1 = arith.constant 0 : i32
    return %c0_i32, %c0_i32_0 : i32, i32
  }
  func.func @transform_2(%arg0: i32) -> (i32, i32) {
    %c0_i32 = arith.constant 0 : i32
    %c0_i32_0 = arith.constant 0 : i32
    return %arg0, %c0_i32 : i32, i32
  }
}

</mosaic_0001>

<llo_original>
// kernel: tpu_custom_call.1
$region0: #{tpu_custom_call.1}
  #allocation0 [shape = 'u32[]', space=smem, size = 0x4, offset = 0x4, fixed_abs, tag = 'smem constant byte address 0x4 - core index']
  #allocation1 [shape = 'u32[72,128]{1,0:T(1,128)}', space=vmem, size = 0x9000, scoped, tag = 'internal scratch']
  %s0 = inlined_call_operand.vmem [shape: f32[1,128], index: 0, kind: input, shape index: {}]
  %s1 = inlined_call_operand.vmem [shape: f32[16,1], index: 1, kind: input, shape index: {}]
  %s2 = inlined_call_operand.vmem [shape: f32[128,32], index: 2, kind: output, shape index: {}]
  %s3 = sld [smem:[#allocation0]]
  $region18: #{tpu_custom_call.1} parent=0
    _
  %s5 = ssub.s32 1, %s3
  %s6 = scalar_select 0, %s5, %s3
  // Predicated region
  $region2: #{tpu_custom_call.1} parent=0 // pred_check
    _
  $region3: #{tpu_custom_call.1} parent=0 // pred_check_branch
    %8 = sbr.rel (0) target = $region5
  $region4: #{tpu_custom_call.1} parent=0 // pred_region
    _
  $region5: #{tpu_custom_call.1} parent=0 // pred_fallthru
    _
  // Predicated region
  $region6: #{tpu_custom_call.1} parent=0 // pred_check
    _
  $region7: #{tpu_custom_call.1} parent=0 // pred_check_branch
    %10 = sbr.rel (0) target = $region9
  $region8: #{tpu_custom_call.1} parent=0 // pred_region
    _
  $region9: #{tpu_custom_call.1} parent=0 // pred_fallthru
    _
  %v11 = vld [vmem:[%s1] sm:$0xff]
  %v12 = vld [vmem:[%s1 + $0x8] sm:$0xff]
  %v13 = vld [vmem:[%s0] sm:$0x1]
  %15 = vset.pattern.permute.xlu0 0
  %16 = vperm.xlu0 %15, %v11
  %v17 = vpop.permute.xlu0 %16
  %20 = vset.pattern.permute.xlu0 0
  %21 = vperm.xlu0 %20, %v12
  %v22 = vpop.permute.xlu0 %21
  %v25 = vperm.slane %v13, 0
  %v27 = vmul.f32 %v17, %v25
  %v28 = vmul.f32 %v22, %v25
  %v29 = vmul.f32 %v27, 6.2831855
  %v30 = vmul.f32 %v28, 6.2831855
  %v31 = vand.u32 2147483647, %v29
  %vm32 = vcmp.le.f32.partialorder %v31, 0.7853982
  %vm33 = vcmp.lt.s32.totalorder %v29, 0
  %v34 = vand.u32 %v29, 2139095040
  %v35 = vshrl.u32 %v34, 23
  %v36 = vsub.s32 %v35, 127
  %v37 = vand.u32 2147483647, %v29
  %v38 = vand.u32 %v37, 8388607
  %v39 = vor.u32 %v38, 8388608
  %v40 = vsub.s32 0, %v39
  %v41 = vadd.s32 %v36, 1
  %vm42 = vcmp.gt.s32.totalorder %v41, 0
  %v43 = vsel %vm42, %v41, 0
  %v44 = vshrl.u32 %v43, 5
  %v45 = vand.u32 %v43, 31
  %v46 = vsub.s32 32, %v45
  %v47 = vshrl.u32 683565275, %v46
  %v48 = vshll.u32 683565275, %v45
  %v49 = vshrl.u32 2475754826, %v46
  %v50 = vor.u32 %v48, %v49
  %v51 = vshll.u32 2475754826, %v45
  %v52 = vshrl.u32 2131351028, %v46
  %v53 = vor.u32 %v51, %v52
  %v54 = vshll.u32 2131351028, %v45
  %v55 = vshrl.u32 2102212464, %v46
  %v56 = vor.u32 %v54, %v55
  %v57 = vshll.u32 2102212464, %v45
  %v58 = vshrl.u32 920167782, %v46
  %v59 = vor.u32 %v57, %v58
  %v60 = vshll.u32 920167782, %v45
  %v61 = vshrl.u32 1326507024, %v46
  %v62 = vor.u32 %v60, %v61
  %vm63 = vcmp.lt.s32.totalorder %v44, 1
  %vm64 = vcmp.lt.s32.totalorder %v44, 2
  %vm65 = vcmp.lt.s32.totalorder %v44, 3
  %vm66 = vcmp.lt.s32.totalorder %v44, 4
  %v67 = vsel %vm63, %v47, %v50
  %v68 = vsel %vm66, %v56, 2102212464
  %v69 = vsel %vm65, %v53, %v68
  %v70 = vsel %vm64, %v67, %v69
  %v71 = vsel %vm63, %v50, %v53
  %v72 = vsel %vm66, %v59, 920167782
  %v73 = vsel %vm65, %v56, %v72
  %v74 = vsel %vm64, %v71, %v73
  %v75 = vsel %vm63, %v53, %v56
  %v76 = vsel %vm66, %v62, 1326507024
  %v77 = vsel %vm65, %v59, %v76
  %v78 = vsel %vm64, %v75, %v77
  %v79 = vshll.u32 %v39, 8
  %v80 = vand.u32 %v79, 65535
  %v81 = vshrl.u32 %v79, 16
  %v82 = vand.u32 %v78, 65535
  %v83 = vshrl.u32 %v78, 16
  %v84 = vmul.u32 %v80, %v82
  %v85 = vmul.u32 %v80, %v83
  %v86 = vmul.u32 %v81, %v82
  %v87 = vmul.u32 %v81, %v83
  %v88 = vshll.u32 %v85, 16
  %v89 = vshrl.u32 %v85, 16
  %v90 = vshll.u32 %v86, 16
  %v91 = vshrl.u32 %v86, 16
  %vm92 = vc.u32 %v84, %v88
  %v93 = vsel %vm92, 1, 0
  %v94 = vadd.s32 %v84, %v88
  %v95 = vadd.s32 %v87, %v93
  %vm96 = vc.u32 %v94, %v90
  %v97 = vsel %vm96, 1, 0
  %v98 = vadd.s32 %v94, %v90
  %v99 = vadd.s32 %v95, %v97
  %v100 = vadd.s32 %v99, %v89
  %v101 = vadd.s32 %v100, %v91
  %v102 = vand.u32 %v79, 65535
  %v103 = vshrl.u32 %v79, 16
  %v104 = vand.u32 %v74, 65535
  %v105 = vshrl.u32 %v74, 16
  %v106 = vmul.u32 %v102, %v104
  %v107 = vmul.u32 %v102, %v105
  %v108 = vmul.u32 %v103, %v104
  %v109 = vmul.u32 %v103, %v105
  %v110 = vshll.u32 %v107, 16
  %v111 = vshrl.u32 %v107, 16
  %v112 = vshll.u32 %v108, 16
  %v113 = vshrl.u32 %v108, 16
  %vm114 = vc.u32 %v106, %v110
  %v115 = vsel %vm114, 1, 0
  %v116 = vadd.s32 %v106, %v110
  %v117 = vadd.s32 %v109, %v115
  %vm118 = vc.u32 %v116, %v112
  %v119 = vsel %vm118, 1, 0
  %v120 = vadd.s32 %v116, %v112
  %v121 = vadd.s32 %v117, %v119
  %v122 = vadd.s32 %v121, %v111
  %v123 = vadd.s32 %v122, %v113
  %v124 = vmul.u32 %v79, %v70
  %v125 = vadd.s32 %v101, %v120
  %vm126 = vc.u32 %v101, %v120
  %v127 = vadd.s32 %v123, 1
  %v128 = vsel %vm126, %v127, %v123
  %v129 = vadd.s32 %v124, %v128
  %v130 = vadd.s32 %v129, 536870912
  %v131 = vshrl.u32 %v130, 30
  %v132 = vshll.u32 %v131, 30
  %v133 = vsub.s32 %v129, %v132
  %vm134 = vcmp.lt.s32.totalorder %v133, 0
  %v135 = vsub.s32 0, %v133
  %v136 = vsel %vm134, %v135, %v133
  %v137 = vclz %v136
  %v138 = vsub.s32 %v137, 2
  %vm139 = vcmp.gt.s32.totalorder 0, %v138
  %v140 = vsel %vm139, 0, %v138
  %v141 = vsub.s32 32, %v140
  %v142 = vshll.u32 %v133, %v140
  %v143 = vshrl.u32 %v125, %v141
  %v144 = vor.u32 %v142, %v143
  %v145 = vsub.s32 4294967266, %v140
  %v146 = vadd.s32 %v145, 127
  %v147 = vshll.u32 %v146, 23
  %v148 = vor.u32 4788187, %v147
  %v149 = vand.u32 2147483647, %v148
  %v151 = vcvt.s32.f32 %v144
  %v152 = vmul.f32 %v151, %v149
  %v153 = vxor.u32 %v152, 2147483648
  %v154 = vsel %vm33, %v153, %v152
  %v155 = vsub.s32 4, %v131
  %v156 = vsel %vm33, %v155, %v131
  %v157 = vsel %vm32, %v29, %v154
  %v158 = vsel %vm32, 0, %v156
  %v159 = vmul.f32 %v157, %v157
  %v160 = vmul.f32 %v159, -0.001358992
  %v161 = vadd.f32 %v160, 0.041655596
  %v162 = vmul.f32 %v159, %v161
  %v163 = vadd.f32 %v162, -0.4999988
  %v164 = vmul.f32 %v159, %v163
  %v165 = vadd.f32 1.0, %v164
  %v166 = vmul.f32 %v157, %v157
  %v167 = vmul.f32 %v166, -0.00019511016
  %v168 = vadd.f32 %v167, 0.008332121
  %v169 = vmul.f32 %v166, %v168
  %v170 = vadd.f32 %v169, -0.16666654
  %v171 = vmul.f32 %v166, %v170
  %v172 = vadd.f32 %v171, 1.0
  %v173 = vmul.f32 %v172, %v157
  %vm174 = vweird.f32 %v29
  %v175 = vadd.s32 %v158, 3
  %v176 = vand.u32 %v175, 3
  %vm177 = vcmp.lt.s32.totalorder %v176, 2
  %vm178 = vcmp.eq.s32.totalorder %v176, 0
  %v179 = vxor.u32 %v173, 2147483648
  %v180 = vsel %vm178, %v165, %v179
  %vm181 = vcmp.eq.s32.totalorder %v176, 2
  %v182 = vxor.u32 %v165, 2147483648
  %v183 = vsel %vm181, %v182, %v173
  %v184 = vsel %vm177, %v180, %v183
  %v185 = vsel %vm174, nan, %v184
  %v186 = vand.u32 2147483647, %v30
  %vm187 = vcmp.le.f32.partialorder %v186, 0.7853982
  %vm188 = vcmp.lt.s32.totalorder %v30, 0
  %v189 = vand.u32 %v30, 2139095040
  %v190 = vshrl.u32 %v189, 23
  %v191 = vsub.s32 %v190, 127
  %v192 = vand.u32 2147483647, %v30
  %v193 = vand.u32 %v192, 8388607
  %v194 = vor.u32 %v193, 8388608
  %v195 = vsub.s32 0, %v194
  %v196 = vadd.s32 %v191, 1
  %vm197 = vcmp.gt.s32.totalorder %v196, 0
  %v198 = vsel %vm197, %v196, 0
  %v199 = vshrl.u32 %v198, 5
  %v200 = vand.u32 %v198, 31
  %v201 = vsub.s32 32, %v200
  %v202 = vshrl.u32 683565275, %v201
  %v203 = vshll.u32 683565275, %v200
  %v204 = vshrl.u32 2475754826, %v201
  %v205 = vor.u32 %v203, %v204
  %v206 = vshll.u32 2475754826, %v200
  %v207 = vshrl.u32 2131351028, %v201
  %v208 = vor.u32 %v206, %v207
  %v209 = vshll.u32 2131351028, %v200
  %v210 = vshrl.u32 2102212464, %v201
  %v211 = vor.u32 %v209, %v210
  %v212 = vshll.u32 2102212464, %v200
  %v213 = vshrl.u32 920167782, %v201
  %v214 = vor.u32 %v212, %v213
  %v215 = vshll.u32 920167782, %v200
  %v216 = vshrl.u32 1326507024, %v201
  %v217 = vor.u32 %v215, %v216
  %vm218 = vcmp.lt.s32.totalorder %v199, 1
  %vm219 = vcmp.lt.s32.totalorder %v199, 2
  %vm220 = vcmp.lt.s32.totalorder %v199, 3
  %vm221 = vcmp.lt.s32.totalorder %v199, 4
  %v222 = vsel %vm218, %v202, %v205
  %v223 = vsel %vm221, %v211, 2102212464
  %v224 = vsel %vm220, %v208, %v223
  %v225 = vsel %vm219, %v222, %v224
  %v226 = vsel %vm218, %v205, %v208
  %v227 = vsel %vm221, %v214, 920167782
  %v228 = vsel %vm220, %v211, %v227
  %v229 = vsel %vm219, %v226, %v228
  %v230 = vsel %vm218, %v208, %v211
  %v231 = vsel %vm221, %v217, 1326507024
  %v232 = vsel %vm220, %v214, %v231
  %v233 = vsel %vm219, %v230, %v232
  %v234 = vshll.u32 %v194, 8
  %v235 = vand.u32 %v234, 65535
  %v236 = vshrl.u32 %v234, 16
  %v237 = vand.u32 %v233, 65535
  %v238 = vshrl.u32 %v233, 16
  %v239 = vmul.u32 %v235, %v237
  %v240 = vmul.u32 %v235, %v238
  %v241 = vmul.u32 %v236, %v237
  %v242 = vmul.u32 %v236, %v238
  %v243 = vshll.u32 %v240, 16
  %v244 = vshrl.u32 %v240, 16
  %v245 = vshll.u32 %v241, 16
  %v246 = vshrl.u32 %v241, 16
  %vm247 = vc.u32 %v239, %v243
  %v248 = vsel %vm247, 1, 0
  %v249 = vadd.s32 %v239, %v243
  %v250 = vadd.s32 %v242, %v248
  %vm251 = vc.u32 %v249, %v245
  %v252 = vsel %vm251, 1, 0
  %v253 = vadd.s32 %v249, %v245
  %v254 = vadd.s32 %v250, %v252
  %v255 = vadd.s32 %v254, %v244
  %v256 = vadd.s32 %v255, %v246
  %v257 = vand.u32 %v234, 65535
  %v258 = vshrl.u32 %v234, 16
  %v259 = vand.u32 %v229, 65535
  %v260 = vshrl.u32 %v229, 16
  %v261 = vmul.u32 %v257, %v259
  %v262 = vmul.u32 %v257, %v260
  %v263 = vmul.u32 %v258, %v259
  %v264 = vmul.u32 %v258, %v260
  %v265 = vshll.u32 %v262, 16
  %v266 = vshrl.u32 %v262, 16
  %v267 = vshll.u32 %v263, 16
  %v268 = vshrl.u32 %v263, 16
  %vm269 = vc.u32 %v261, %v265
  %v270 = vsel %vm269, 1, 0
  %v271 = vadd.s32 %v261, %v265
  %v272 = vadd.s32 %v264, %v270
  %vm273 = vc.u32 %v271, %v267
  %v274 = vsel %vm273, 1, 0
  %v275 = vadd.s32 %v271, %v267
  %v276 = vadd.s32 %v272, %v274
  %v277 = vadd.s32 %v276, %v266
  %v278 = vadd.s32 %v277, %v268
  %v279 = vmul.u32 %v234, %v225
  %v280 = vadd.s32 %v256, %v275
  %vm281 = vc.u32 %v256, %v275
  %v282 = vadd.s32 %v278, 1
  %v283 = vsel %vm281, %v282, %v278
  %v284 = vadd.s32 %v279, %v283
  %v285 = vadd.s32 %v284, 536870912
  %v286 = vshrl.u32 %v285, 30
  %v287 = vshll.u32 %v286, 30
  %v288 = vsub.s32 %v284, %v287
  %vm289 = vcmp.lt.s32.totalorder %v288, 0
  %v290 = vsub.s32 0, %v288
  %v291 = vsel %vm289, %v290, %v288
  %v292 = vclz %v291
  %v293 = vsub.s32 %v292, 2
  %vm294 = vcmp.gt.s32.totalorder 0, %v293
  %v295 = vsel %vm294, 0, %v293
  %v296 = vsub.s32 32, %v295
  %v297 = vshll.u32 %v288, %v295
  %v298 = vshrl.u32 %v280, %v296
  %v299 = vor.u32 %v297, %v298
  %v300 = vsub.s32 4294967266, %v295
  %v301 = vadd.s32 %v300, 127
  %v302 = vshll.u32 %v301, 23
  %v303 = vor.u32 4788187, %v302
  %v304 = vand.u32 2147483647, %v303
  %v306 = vcvt.s32.f32 %v299
  %v307 = vmul.f32 %v306, %v304
  %v308 = vxor.u32 %v307, 2147483648
  %v309 = vsel %vm188, %v308, %v307
  %v310 = vsub.s32 4, %v286
  %v311 = vsel %vm188, %v310, %v286
  %v312 = vsel %vm187, %v30, %v309
  %v313 = vsel %vm187, 0, %v311
  %v314 = vmul.f32 %v312, %v312
  %v315 = vmul.f32 %v314, -0.001358992
  %v316 = vadd.f32 %v315, 0.041655596
  %v317 = vmul.f32 %v314, %v316
  %v318 = vadd.f32 %v317, -0.4999988
  %v319 = vmul.f32 %v314, %v318
  %v320 = vadd.f32 1.0, %v319
  %v321 = vmul.f32 %v312, %v312
  %v322 = vmul.f32 %v321, -0.00019511016
  %v323 = vadd.f32 %v322, 0.008332121
  %v324 = vmul.f32 %v321, %v323
  %v325 = vadd.f32 %v324, -0.16666654
  %v326 = vmul.f32 %v321, %v325
  %v327 = vadd.f32 %v326, 1.0
  %v328 = vmul.f32 %v327, %v312
  %vm329 = vweird.f32 %v30
  %v330 = vadd.s32 %v313, 3
  %v331 = vand.u32 %v330, 3
  %vm332 = vcmp.lt.s32.totalorder %v331, 2
  %vm333 = vcmp.eq.s32.totalorder %v331, 0
  %v334 = vxor.u32 %v328, 2147483648
  %v335 = vsel %vm333, %v320, %v334
  %vm336 = vcmp.eq.s32.totalorder %v331, 2
  %v337 = vxor.u32 %v320, 2147483648
  %v338 = vsel %vm336, %v337, %v328
  %v339 = vsel %vm332, %v335, %v338
  %v340 = vsel %vm329, nan, %v339
  %341 = vxpose.xlu0.b32.start [1/16] %v185, 128
  %342 = vxpose.xlu0.b32.cont [2/16] %v340, 128
  %343 = vxpose.xlu0.b32.cont [3/16] 0.0, 128
  %344 = vxpose.xlu0.b32.cont [4/16] 0.0, 128
  %345 = vxpose.xlu0.b32.cont [5/16] 0.0, 128
  %346 = vxpose.xlu0.b32.cont [6/16] 0.0, 128
  %347 = vxpose.xlu0.b32.cont [7/16] 0.0, 128
  %348 = vxpose.xlu0.b32.cont [8/16] 0.0, 128
  %349 = vxpose.xlu0.b32.cont [9/16] 0.0, 128
  %350 = vxpose.xlu0.b32.cont [10/16] 0.0, 128
  %351 = vxpose.xlu0.b32.cont [11/16] 0.0, 128
  %352 = vxpose.xlu0.b32.cont [12/16] 0.0, 128
  %353 = vxpose.xlu0.b32.cont [13/16] 0.0, 128
  %354 = vxpose.xlu0.b32.cont [14/16] 0.0, 128
  %355 = vxpose.xlu0.b32.cont [15/16] 0.0, 128
  %356 = vxpose.xlu0.b32.end [16/16] 0.0, 128
  %v357 = vpop.trf.xlu0
  %v358 = vpop.trf.xlu0
  %v359 = vpop.trf.xlu0
  %v360 = vpop.trf.xlu0
  %v361 = vpop.trf.xlu0
  %v362 = vpop.trf.xlu0
  %v363 = vpop.trf.xlu0
  %v364 = vpop.trf.xlu0
  %v365 = vpop.trf.xlu0
  %v366 = vpop.trf.xlu0
  %v367 = vpop.trf.xlu0
  %v368 = vpop.trf.xlu0
  %v369 = vpop.trf.xlu0
  %v370 = vpop.trf.xlu0
  %v371 = vpop.trf.xlu0
  %v372 = vpop.trf.xlu0
  %v373 = vand.u32 2147483647, %v29
  %vm374 = vcmp.le.f32.partialorder %v373, 0.7853982
  %vm375 = vcmp.lt.s32.totalorder %v29, 0
  %v376 = vand.u32 %v29, 2139095040
  %v377 = vshrl.u32 %v376, 23
  %v378 = vsub.s32 %v377, 127
  %v379 = vand.u32 2147483647, %v29
  %v380 = vand.u32 %v379, 8388607
  %v381 = vor.u32 %v380, 8388608
  %v382 = vsub.s32 0, %v381
  %v383 = vadd.s32 %v378, 1
  %vm384 = vcmp.gt.s32.totalorder %v383, 0
  %v385 = vsel %vm384, %v383, 0
  %v386 = vshrl.u32 %v385, 5
  %v387 = vand.u32 %v385, 31
  %v388 = vsub.s32 32, %v387
  %v389 = vshrl.u32 683565275, %v388
  %v390 = vshll.u32 683565275, %v387
  %v391 = vshrl.u32 2475754826, %v388
  %v392 = vor.u32 %v390, %v391
  %v393 = vshll.u32 2475754826, %v387
  %v394 = vshrl.u32 2131351028, %v388
  %v395 = vor.u32 %v393, %v394
  %v396 = vshll.u32 2131351028, %v387
  %v397 = vshrl.u32 2102212464, %v388
  %v398 = vor.u32 %v396, %v397
  %v399 = vshll.u32 2102212464, %v387
  %v400 = vshrl.u32 920167782, %v388
  %v401 = vor.u32 %v399, %v400
  %v402 = vshll.u32 920167782, %v387
  %v403 = vshrl.u32 1326507024, %v388
  %v404 = vor.u32 %v402, %v403
  %vm405 = vcmp.lt.s32.totalorder %v386, 1
  %vm406 = vcmp.lt.s32.totalorder %v386, 2
  %vm407 = vcmp.lt.s32.totalorder %v386, 3
  %vm408 = vcmp.lt.s32.totalorder %v386, 4
  %v409 = vsel %vm405, %v389, %v392
  %v410 = vsel %vm408, %v398, 2102212464
  %v411 = vsel %vm407, %v395, %v410
  %v412 = vsel %vm406, %v409, %v411
  %v413 = vsel %vm405, %v392, %v395
  %v414 = vsel %vm408, %v401, 920167782
  %v415 = vsel %vm407, %v398, %v414
  %v416 = vsel %vm406, %v413, %v415
  %v417 = vsel %vm405, %v395, %v398
  %v418 = vsel %vm408, %v404, 1326507024
  %v419 = vsel %vm407, %v401, %v418
  %v420 = vsel %vm406, %v417, %v419
  %v421 = vshll.u32 %v381, 8
  %v422 = vand.u32 %v421, 65535
  %v423 = vshrl.u32 %v421, 16
  %v424 = vand.u32 %v420, 65535
  %v425 = vshrl.u32 %v420, 16
  %v426 = vmul.u32 %v422, %v424
  %v427 = vmul.u32 %v422, %v425
  %v428 = vmul.u32 %v423, %v424
  %v429 = vmul.u32 %v423, %v425
  %v430 = vshll.u32 %v427, 16
  %v431 = vshrl.u32 %v427, 16
  %v432 = vshll.u32 %v428, 16
  %v433 = vshrl.u32 %v428, 16
  %vm434 = vc.u32 %v426, %v430
  %v435 = vsel %vm434, 1, 0
  %v436 = vadd.s32 %v426, %v430
  %v437 = vadd.s32 %v429, %v435
  %vm438 = vc.u32 %v436, %v432
  %v439 = vsel %vm438, 1, 0
  %v440 = vadd.s32 %v436, %v432
  %v441 = vadd.s32 %v437, %v439
  %v442 = vadd.s32 %v441, %v431
  %v443 = vadd.s32 %v442, %v433
  %v444 = vand.u32 %v421, 65535
  %v445 = vshrl.u32 %v421, 16
  %v446 = vand.u32 %v416, 65535
  %v447 = vshrl.u32 %v416, 16
  %v448 = vmul.u32 %v444, %v446
  %v449 = vmul.u32 %v444, %v447
  %v450 = vmul.u32 %v445, %v446
  %v451 = vmul.u32 %v445, %v447
  %v452 = vshll.u32 %v449, 16
  %v453 = vshrl.u32 %v449, 16
  %v454 = vshll.u32 %v450, 16
  %v455 = vshrl.u32 %v450, 16
  %vm456 = vc.u32 %v448, %v452
  %v457 = vsel %vm456, 1, 0
  %v458 = vadd.s32 %v448, %v452
  %v459 = vadd.s32 %v451, %v457
  %vm460 = vc.u32 %v458, %v454
  %v461 = vsel %vm460, 1, 0
  %v462 = vadd.s32 %v458, %v454
  %v463 = vadd.s32 %v459, %v461
  %v464 = vadd.s32 %v463, %v453
  %v465 = vadd.s32 %v464, %v455
  %v466 = vmul.u32 %v421, %v412
  %v467 = vadd.s32 %v443, %v462
  %vm468 = vc.u32 %v443, %v462
  %v469 = vadd.s32 %v465, 1
  %v470 = vsel %vm468, %v469, %v465
  %v471 = vadd.s32 %v466, %v470
  %v472 = vadd.s32 %v471, 536870912
  %v473 = vshrl.u32 %v472, 30
  %v474 = vshll.u32 %v473, 30
  %v475 = vsub.s32 %v471, %v474
  %vm476 = vcmp.lt.s32.totalorder %v475, 0
  %v477 = vsub.s32 0, %v475
  %v478 = vsel %vm476, %v477, %v475
  %v479 = vclz %v478
  %v480 = vsub.s32 %v479, 2
  %vm481 = vcmp.gt.s32.totalorder 0, %v480
  %v482 = vsel %vm481, 0, %v480
  %v483 = vsub.s32 32, %v482
  %v484 = vshll.u32 %v475, %v482
  %v485 = vshrl.u32 %v467, %v483
  %v486 = vor.u32 %v484, %v485
  %v487 = vsub.s32 4294967266, %v482
  %v488 = vadd.s32 %v487, 127
  %v489 = vshll.u32 %v488, 23
  %v490 = vor.u32 4788187, %v489
  %v491 = vand.u32 2147483647, %v490
  %v493 = vcvt.s32.f32 %v486
  %v494 = vmul.f32 %v493, %v491
  %v495 = vxor.u32 %v494, 2147483648
  %v496 = vsel %vm375, %v495, %v494
  %v497 = vsub.s32 4, %v473
  %v498 = vsel %vm375, %v497, %v473
  %v499 = vsel %vm374, %v29, %v496
  %v500 = vsel %vm374, 0, %v498
  %v501 = vmul.f32 %v499, %v499
  %v502 = vmul.f32 %v501, -0.001358992
  %v503 = vadd.f32 %v502, 0.041655596
  %v504 = vmul.f32 %v501, %v503
  %v505 = vadd.f32 %v504, -0.4999988
  %v506 = vmul.f32 %v501, %v505
  %v507 = vadd.f32 1.0, %v506
  %v508 = vmul.f32 %v499, %v499
  %v509 = vmul.f32 %v508, -0.00019511016
  %v510 = vadd.f32 %v509, 0.008332121
  %v511 = vmul.f32 %v508, %v510
  %v512 = vadd.f32 %v511, -0.16666654
  %v513 = vmul.f32 %v508, %v512
  %v514 = vadd.f32 %v513, 1.0
  %v515 = vmul.f32 %v514, %v499
  %vm516 = vweird.f32 %v29
  %v517 = vand.u32 %v500, 3
  %vm518 = vcmp.lt.s32.totalorder %v517, 2
  %vm519 = vcmp.eq.s32.totalorder %v517, 0
  %v520 = vxor.u32 %v515, 2147483648
  %v521 = vsel %vm519, %v507, %v520
  %vm522 = vcmp.eq.s32.totalorder %v517, 2
  %v523 = vxor.u32 %v507, 2147483648
  %v524 = vsel %vm522, %v523, %v515
  %v525 = vsel %vm518, %v521, %v524
  %v526 = vsel %vm516, nan, %v525
  %v527 = vand.u32 2147483647, %v30
  %vm528 = vcmp.le.f32.partialorder %v527, 0.7853982
  %vm529 = vcmp.lt.s32.totalorder %v30, 0
  %v530 = vand.u32 %v30, 2139095040
  %v531 = vshrl.u32 %v530, 23
  %v532 = vsub.s32 %v531, 127
  %v533 = vand.u32 2147483647, %v30
  %v534 = vand.u32 %v533, 8388607
  %v535 = vor.u32 %v534, 8388608
  %v536 = vsub.s32 0, %v535
  %v537 = vadd.s32 %v532, 1
  %vm538 = vcmp.gt.s32.totalorder %v537, 0
  %v539 = vsel %vm538, %v537, 0
  %v540 = vshrl.u32 %v539, 5
  %v541 = vand.u32 %v539, 31
  %v542 = vsub.s32 32, %v541
  %v543 = vshrl.u32 683565275, %v542
  %v544 = vshll.u32 683565275, %v541
  %v545 = vshrl.u32 2475754826, %v542
  %v546 = vor.u32 %v544, %v545
  %v547 = vshll.u32 2475754826, %v541
  %v548 = vshrl.u32 2131351028, %v542
  %v549 = vor.u32 %v547, %v548
  %v550 = vshll.u32 2131351028, %v541
  %v551 = vshrl.u32 2102212464, %v542
  %v552 = vor.u32 %v550, %v551
  %v553 = vshll.u32 2102212464, %v541
  %v554 = vshrl.u32 920167782, %v542
  %v555 = vor.u32 %v553, %v554
  %v556 = vshll.u32 920167782, %v541
  %v557 = vshrl.u32 1326507024, %v542
  %v558 = vor.u32 %v556, %v557
  %vm559 = vcmp.lt.s32.totalorder %v540, 1
  %vm560 = vcmp.lt.s32.totalorder %v540, 2
  %vm561 = vcmp.lt.s32.totalorder %v540, 3
  %vm562 = vcmp.lt.s32.totalorder %v540, 4
  %v563 = vsel %vm559, %v543, %v546
  %v564 = vsel %vm562, %v552, 2102212464
  %v565 = vsel %vm561, %v549, %v564
  %v566 = vsel %vm560, %v563, %v565
  %v567 = vsel %vm559, %v546, %v549
  %v568 = vsel %vm562, %v555, 920167782
  %v569 = vsel %vm561, %v552, %v568
  %v570 = vsel %vm560, %v567, %v569
  %v571 = vsel %vm559, %v549, %v552
  %v572 = vsel %vm562, %v558, 1326507024
  %v573 = vsel %vm561, %v555, %v572
  %v574 = vsel %vm560, %v571, %v573
  %v575 = vshll.u32 %v535, 8
  %v576 = vand.u32 %v575, 65535
  %v577 = vshrl.u32 %v575, 16
  %v578 = vand.u32 %v574, 65535
  %v579 = vshrl.u32 %v574, 16
  %v580 = vmul.u32 %v576, %v578
  %v581 = vmul.u32 %v576, %v579
  %v582 = vmul.u32 %v577, %v578
  %v583 = vmul.u32 %v577, %v579
  %v584 = vshll.u32 %v581, 16
  %v585 = vshrl.u32 %v581, 16
  %v586 = vshll.u32 %v582, 16
  %v587 = vshrl.u32 %v582, 16
  %vm588 = vc.u32 %v580, %v584
  %v589 = vsel %vm588, 1, 0
  %v590 = vadd.s32 %v580, %v584
  %v591 = vadd.s32 %v583, %v589
  %vm592 = vc.u32 %v590, %v586
  %v593 = vsel %vm592, 1, 0
  %v594 = vadd.s32 %v590, %v586
  %v595 = vadd.s32 %v591, %v593
  %v596 = vadd.s32 %v595, %v585
  %v597 = vadd.s32 %v596, %v587
  %v598 = vand.u32 %v575, 65535
  %v599 = vshrl.u32 %v575, 16
  %v600 = vand.u32 %v570, 65535
  %v601 = vshrl.u32 %v570, 16
  %v602 = vmul.u32 %v598, %v600
  %v603 = vmul.u32 %v598, %v601
  %v604 = vmul.u32 %v599, %v600
  %v605 = vmul.u32 %v599, %v601
  %v606 = vshll.u32 %v603, 16
  %v607 = vshrl.u32 %v603, 16
  %v608 = vshll.u32 %v604, 16
  %v609 = vshrl.u32 %v604, 16
  %vm610 = vc.u32 %v602, %v606
  %v611 = vsel %vm610, 1, 0
  %v612 = vadd.s32 %v602, %v606
  %v613 = vadd.s32 %v605, %v611
  %vm614 = vc.u32 %v612, %v608
  %v615 = vsel %vm614, 1, 0
  %v616 = vadd.s32 %v612, %v608
  %v617 = vadd.s32 %v613, %v615
  %v618 = vadd.s32 %v617, %v607
  %v619 = vadd.s32 %v618, %v609
  %v620 = vmul.u32 %v575, %v566
  %v621 = vadd.s32 %v597, %v616
  %vm622 = vc.u32 %v597, %v616
  %v623 = vadd.s32 %v619, 1
  %v624 = vsel %vm622, %v623, %v619
  %v625 = vadd.s32 %v620, %v624
  %v626 = vadd.s32 %v625, 536870912
  %v627 = vshrl.u32 %v626, 30
  %v628 = vshll.u32 %v627, 30
  %v629 = vsub.s32 %v625, %v628
  %vm630 = vcmp.lt.s32.totalorder %v629, 0
  %v631 = vsub.s32 0, %v629
  %v632 = vsel %vm630, %v631, %v629
  %v633 = vclz %v632
  %v634 = vsub.s32 %v633, 2
  %vm635 = vcmp.gt.s32.totalorder 0, %v634
  %v636 = vsel %vm635, 0, %v634
  %v637 = vsub.s32 32, %v636
  %v638 = vshll.u32 %v629, %v636
  %v639 = vshrl.u32 %v621, %v637
  %v640 = vor.u32 %v638, %v639
  %v641 = vsub.s32 4294967266, %v636
  %v642 = vadd.s32 %v641, 127
  %v643 = vshll.u32 %v642, 23
  %v644 = vor.u32 4788187, %v643
  %v645 = vand.u32 2147483647, %v644
  %v647 = vcvt.s32.f32 %v640
  %v648 = vmul.f32 %v647, %v645
  %v649 = vxor.u32 %v648, 2147483648
  %v650 = vsel %vm529, %v649, %v648
  %v651 = vsub.s32 4, %v627
  %v652 = vsel %vm529, %v651, %v627
  %v653 = vsel %vm528, %v30, %v650
  %v654 = vsel %vm528, 0, %v652
  %v655 = vmul.f32 %v653, %v653
  %v656 = vmul.f32 %v655, -0.001358992
  %v657 = vadd.f32 %v656, 0.041655596
  %v658 = vmul.f32 %v655, %v657
  %v659 = vadd.f32 %v658, -0.4999988
  %v660 = vmul.f32 %v655, %v659
  %v661 = vadd.f32 1.0, %v660
  %v662 = vmul.f32 %v653, %v653
  %v663 = vmul.f32 %v662, -0.00019511016
  %v664 = vadd.f32 %v663, 0.008332121
  %v665 = vmul.f32 %v662, %v664
  %v666 = vadd.f32 %v665, -0.16666654
  %v667 = vmul.f32 %v662, %v666
  %v668 = vadd.f32 %v667, 1.0
  %v669 = vmul.f32 %v668, %v653
  %vm670 = vweird.f32 %v30
  %v671 = vand.u32 %v654, 3
  %vm672 = vcmp.lt.s32.totalorder %v671, 2
  %vm673 = vcmp.eq.s32.totalorder %v671, 0
  %v674 = vxor.u32 %v669, 2147483648
  %v675 = vsel %vm673, %v661, %v674
  %vm676 = vcmp.eq.s32.totalorder %v671, 2
  %v677 = vxor.u32 %v661, 2147483648
  %v678 = vsel %vm676, %v677, %v669
  %v679 = vsel %vm672, %v675, %v678
  %v680 = vsel %vm670, nan, %v679
  %681 = vxpose.xlu0.b32.start [1/16] %v526, 128
  %682 = vxpose.xlu0.b32.cont [2/16] %v680, 128
  %683 = vxpose.xlu0.b32.cont [3/16] 0.0, 128
  %684 = vxpose.xlu0.b32.cont [4/16] 0.0, 128
  %685 = vxpose.xlu0.b32.cont [5/16] 0.0, 128
  %686 = vxpose.xlu0.b32.cont [6/16] 0.0, 128
  %687 = vxpose.xlu0.b32.cont [7/16] 0.0, 128
  %688 = vxpose.xlu0.b32.cont [8/16] 0.0, 128
  %689 = vxpose.xlu0.b32.cont [9/16] 0.0, 128
  %690 = vxpose.xlu0.b32.cont [10/16] 0.0, 128
  %691 = vxpose.xlu0.b32.cont [11/16] 0.0, 128
  %692 = vxpose.xlu0.b32.cont [12/16] 0.0, 128
  %693 = vxpose.xlu0.b32.cont [13/16] 0.0, 128
  %694 = vxpose.xlu0.b32.cont [14/16] 0.0, 128
  %695 = vxpose.xlu0.b32.cont [15/16] 0.0, 128
  %696 = vxpose.xlu0.b32.end [16/16] 0.0, 128
  %v697 = vpop.trf.xlu0
  %v698 = vpop.trf.xlu0
  %v699 = vpop.trf.xlu0
  %v700 = vpop.trf.xlu0
  %v701 = vpop.trf.xlu0
  %v702 = vpop.trf.xlu0
  %v703 = vpop.trf.xlu0
  %v704 = vpop.trf.xlu0
  %v705 = vpop.trf.xlu0
  %v706 = vpop.trf.xlu0
  %v707 = vpop.trf.xlu0
  %v708 = vpop.trf.xlu0
  %v709 = vpop.trf.xlu0
  %v710 = vpop.trf.xlu0
  %v711 = vpop.trf.xlu0
  %v712 = vpop.trf.xlu0
  %729 = vrot.lane.b32.xlu0 %v697, 16
  %v730 = vpop.permute.xlu0 %729
  %731 = vrot.lane.b32.xlu0 %v698, 16
  %v732 = vpop.permute.xlu0 %731
  %733 = vrot.lane.b32.xlu0 %v699, 16
  %v734 = vpop.permute.xlu0 %733
  %735 = vrot.lane.b32.xlu0 %v700, 16
  %v736 = vpop.permute.xlu0 %735
  %737 = vrot.lane.b32.xlu0 %v701, 16
  %v738 = vpop.permute.xlu0 %737
  %739 = vrot.lane.b32.xlu0 %v702, 16
  %v740 = vpop.permute.xlu0 %739
  %741 = vrot.lane.b32.xlu0 %v703, 16
  %v742 = vpop.permute.xlu0 %741
  %743 = vrot.lane.b32.xlu0 %v704, 16
  %v744 = vpop.permute.xlu0 %743
  %745 = vrot.lane.b32.xlu0 %v705, 16
  %v746 = vpop.permute.xlu0 %745
  %747 = vrot.lane.b32.xlu0 %v706, 16
  %v748 = vpop.permute.xlu0 %747
  %749 = vrot.lane.b32.xlu0 %v707, 16
  %v750 = vpop.permute.xlu0 %749
  %751 = vrot.lane.b32.xlu0 %v708, 16
  %v752 = vpop.permute.xlu0 %751
  %753 = vrot.lane.b32.xlu0 %v709, 16
  %v754 = vpop.permute.xlu0 %753
  %755 = vrot.lane.b32.xlu0 %v710, 16
  %v756 = vpop.permute.xlu0 %755
  %757 = vrot.lane.b32.xlu0 %v711, 16
  %v758 = vpop.permute.xlu0 %757
  %759 = vrot.lane.b32.xlu0 %v712, 16
  %v760 = vpop.permute.xlu0 %759
  %vm777 = vcmask 130048
  %v778 = vsel %vm777, %v357, %v730
  %v779 = vsel %vm777, %v358, %v732
  %v780 = vsel %vm777, %v359, %v734
  %v781 = vsel %vm777, %v360, %v736
  %v782 = vsel %vm777, %v361, %v738
  %v783 = vsel %vm777, %v362, %v740
  %v784 = vsel %vm777, %v363, %v742
  %v785 = vsel %vm777, %v364, %v744
  %v786 = vsel %vm777, %v365, %v746
  %v787 = vsel %vm777, %v366, %v748
  %v788 = vsel %vm777, %v367, %v750
  %v789 = vsel %vm777, %v368, %v752
  %v790 = vsel %vm777, %v369, %v754
  %v791 = vsel %vm777, %v370, %v756
  %v792 = vsel %vm777, %v371, %v758
  %v793 = vsel %vm777, %v372, %v760
  %vm794 = vcmask 261120
  %795 = vst.msk [vmem:[%s2] sm:$0xff] %vm794, %v778
  %796 = vst.msk [vmem:[%s2 + $0x8] sm:$0xff] %vm794, %v779
  %797 = vst.msk [vmem:[%s2 + $0x10] sm:$0xff] %vm794, %v780
  %798 = vst.msk [vmem:[%s2 + $0x18] sm:$0xff] %vm794, %v781
  %799 = vst.msk [vmem:[%s2 + $0x20] sm:$0xff] %vm794, %v782
  %800 = vst.msk [vmem:[%s2 + $0x28] sm:$0xff] %vm794, %v783
  %801 = vst.msk [vmem:[%s2 + $0x30] sm:$0xff] %vm794, %v784
  %802 = vst.msk [vmem:[%s2 + $0x38] sm:$0xff] %vm794, %v785
  %803 = vst.msk [vmem:[%s2 + $0x40] sm:$0xff] %vm794, %v786
  %804 = vst.msk [vmem:[%s2 + $0x48] sm:$0xff] %vm794, %v787
  %805 = vst.msk [vmem:[%s2 + $0x50] sm:$0xff] %vm794, %v788
  %806 = vst.msk [vmem:[%s2 + $0x58] sm:$0xff] %vm794, %v789
  %807 = vst.msk [vmem:[%s2 + $0x60] sm:$0xff] %vm794, %v790
  %808 = vst.msk [vmem:[%s2 + $0x68] sm:$0xff] %vm794, %v791
  %809 = vst.msk [vmem:[%s2 + $0x70] sm:$0xff] %vm794, %v792
  %810 = vst.msk [vmem:[%s2 + $0x78] sm:$0xff] %vm794, %v793
  // Predicated region
  $region10: #{tpu_custom_call.1} parent=0 // pred_check
    _
  $region11: #{tpu_custom_call.1} parent=0 // pred_check_branch
    %812 = sbr.rel (0) target = $region13
  $region12: #{tpu_custom_call.1} parent=0 // pred_region
    _
  $region13: #{tpu_custom_call.1} parent=0 // pred_fallthru
    _
  // Predicated region
  $region14: #{tpu_custom_call.1} parent=0 // pred_check
    _
  $region15: #{tpu_custom_call.1} parent=0 // pred_check_branch
    %814 = sbr.rel (0) target = $region17
  $region16: #{tpu_custom_call.1} parent=0 // pred_region
    _
  $region17: #{tpu_custom_call.1} parent=0 // pred_fallthru
    _

</llo_original>
